<compile_context>
chip_gen: v7x
topology: tpu7x:2x2x1
jax: 0.10.0
libtpu: 0.0.40
codegen_flags: <defaults>
</compile_context>

<pallas_src>
import functools

import jax
import jax.numpy as jnp
from jax.experimental import pallas as pl
from jax.experimental.pallas import tpu as pltpu

NUM_CLASSES = 10
PAD_FEATURES = 128     # lane width; all hidden/output dims padded to this
NUM_STACKED = 5        # fc1..fc5 after padding are all (128, 128)
MASK_NEG = -1e30       # folded log-softmax mask for pad columns of the last bias


def _mlp_kernel(x_ref, w0_ref, ws_ref, bs_ref, out_ref):
    """Full MLP forward + log_softmax for one batch tile, entirely in VMEM.

    x_ref  : (bt, image_size) bf16
    w0_ref : (image_size, 128) bf16
    ws_ref : (5, 128, 128)     bf16   -- fc1..fc5 weights, zero-padded
    bs_ref : (6, 128)          f32    -- b0..b5; b5 pad cols hold -1e30
    out_ref: (bt, 128)         f32    -- cols >= 10 are pad (huge negatives)
    """

    def chain(x_bf16):
        # fc0 + ReLU
        z = jnp.dot(x_bf16, w0_ref[...], preferred_element_type=jnp.float32)
        h = jnp.maximum(z + bs_ref[0], 0.0).astype(jnp.bfloat16)
        # fc1..fc4 + ReLU (static unrolled loop over the stacked weights)
        for l in range(NUM_STACKED - 1):
            z = jnp.dot(h, ws_ref[l], preferred_element_type=jnp.float32)
            h = jnp.maximum(z + bs_ref[l + 1], 0.0).astype(jnp.bfloat16)
        # fc5 (no ReLU); pad columns pick up -1e30 straight from the bias, so
        # no explicit masking is needed for the log-softmax below.
        logits = jnp.dot(h, ws_ref[NUM_STACKED - 1],
                         preferred_element_type=jnp.float32)
        logits = logits + bs_ref[NUM_STACKED]
        m = jnp.max(logits, axis=1, keepdims=True)
        shifted = logits - m
        lse = jnp.log(jnp.sum(jnp.exp(shifted), axis=1, keepdims=True))
        return shifted - lse

    b = x_ref.shape[0]
    if 32 <= b < 512 and b % 32 == 0:
        # Small tiles: two independent halves interleave the strict 6-layer
        # dependency chains on the MXU instead of stalling between layers.
        half = b // 2
        out_ref[:half, :] = chain(x_ref[:half, :]).astype(out_ref.dtype)
        out_ref[half:, :] = chain(x_ref[half:, :]).astype(out_ref.dtype)
    else:
        # Large tiles: a single long vmatmul stream already hides MXU drain.
        out_ref[...] = chain(x_ref[...]).astype(out_ref.dtype)


def _pad_params(params, image_size):
    """Zero-pad every layer to 128 lanes; weights -> bf16, biases f32.

    Zero padding keeps the math exact: padded activation columns stay
    ReLU(0 + 0) = 0 and padded weight rows only ever multiply those zeros.
    The final bias carries -1e30 in its pad columns, which folds the
    log-softmax pad mask into the bias add for free.
    """
    w0, b0 = params[0]
    w0_p = (jnp.zeros((image_size, PAD_FEATURES), jnp.float32)
            .at[:w0.shape[0], :w0.shape[1]].set(w0))
    bs = [jnp.zeros((PAD_FEATURES,), jnp.float32)
          .at[:b0.size].set(b0.reshape(-1))]

    ws = []
    last = len(params) - 1
    for i in range(1, len(params)):
        w, b = params[i]
        fan_in, fan_out = w.shape
        w_p = (jnp.zeros((PAD_FEATURES, PAD_FEATURES), jnp.float32)
               .at[:fan_in, :fan_out].set(w))
        if i == last:
            b_p = (jnp.full((PAD_FEATURES,), MASK_NEG, jnp.float32)
                   .at[:fan_out].set(b.reshape(-1)))
        else:
            b_p = (jnp.zeros((PAD_FEATURES,), jnp.float32)
                   .at[:fan_out].set(b.reshape(-1)))
        ws.append(w_p)
        bs.append(b_p)

    return (w0_p.astype(jnp.bfloat16),
            jnp.stack(ws).astype(jnp.bfloat16),   # (5, 128, 128) bf16
            jnp.stack(bs))                        # (6, 128) f32


def _pick_tiling(n, batch_tile):
    """Pick (bt, n_pad) with bt % 16 == 0 and an even (>=2 when feasible)
    number of grid steps so v7x's two TensorCores get equal work; row padding
    stays below 16 * grid rows (never a whole extra tile)."""
    bt_target = max(16, int(batch_tile))
    grid = max(1, -(-n // bt_target))
    if grid == 1 and n >= 256:
        grid = 2                      # big single tile -> split for megacore
    if grid > 1 and grid % 2 == 1:
        grid += 1                     # even step count across both TCs
    bt = ((-(-n // grid)) + 15) // 16 * 16
    return bt, grid * bt


def model_d_forward_padded(x, params, *, image_size, batch_tile=2048):
    """Runs the kernel; returns the padded (n_pad, 128) log-prob block and n.

    Columns >= NUM_CLASSES and rows >= n are padding.  Consumers that can
    fuse the slice downstream should use this to avoid an extra HBM pass.
    """
    x = x.reshape(-1, image_size)
    n = x.shape[0]
    bt, n_pad = _pick_tiling(n, batch_tile)

    # Cast to bf16 BEFORE padding: one wrapper HBM pass at half the bytes.
    if x.dtype != jnp.bfloat16:
        x = x.astype(jnp.bfloat16)
    if n_pad != n:
        x = jnp.pad(x, ((0, n_pad - n), (0, 0)))

    w0, ws, bs = _pad_params(params, image_size)

    const_map2 = lambda i: (0, 0)
    const_map3 = lambda i: (0, 0, 0)
    x_map = lambda i: (i, 0)

    out = pl.pallas_call(
        _mlp_kernel,
        out_shape=jax.ShapeDtypeStruct((n_pad, PAD_FEATURES), jnp.float32),
        grid_spec=pltpu.PrefetchScalarGridSpec(
            num_scalar_prefetch=0,
            grid=(n_pad // bt,),
            in_specs=[
                pl.BlockSpec((bt, image_size), x_map),
                pl.BlockSpec(w0.shape, const_map2),
                pl.BlockSpec(ws.shape, const_map3),
                pl.BlockSpec(bs.shape, const_map2),
            ],
            out_specs=pl.BlockSpec((bt, PAD_FEATURES), x_map),
        ),
        compiler_params=pltpu.CompilerParams(
            dimension_semantics=("parallel",),
            vmem_limit_bytes=32 * 1024 * 1024),
    )(x, w0, ws, bs)
    return out, n


def model_d_forward(x, params, *, image_size, batch_tile=2048):
    """API-compatible wrapper: returns (N, 10) log-probabilities."""
    out, n = model_d_forward_padded(x, params, image_size=image_size,
                                    batch_tile=batch_tile)
    # NOTE: this slice is a separate XLA copy; latency-critical callers should
    # consume model_d_forward_padded directly and fuse the [:, :10] slice.
    return out[:n, :NUM_CLASSES]


def init_params(key, image_size):
    """Deterministic init mimicking nn.Linear default: U(-1/sqrt(fan_in), +)."""
    dims = [(image_size, 128), (128, 64), (64, 10), (10, 10), (10, 10), (10, 10)]
    params = []
    for (fan_in, fan_out) in dims:
        key, kw, kb = jax.random.split(key, 3)
        bound = 1.0 / jnp.sqrt(fan_in)
        w = jax.random.uniform(kw, (fan_in, fan_out), jnp.float32, -bound, bound)
        b = jax.random.uniform(kb, (1, fan_out), jnp.float32, -bound, bound)
        params.append((w, b))
    return params


def reference_forward(x, params, image_size):
    """Pure-JAX reference with the same bf16 quantization of matmul operands."""
    h = x.reshape(-1, image_size).astype(jnp.bfloat16)
    z = None
    for i, (w, b) in enumerate(params):
        z = jnp.dot(h, w.astype(jnp.bfloat16),
                    preferred_element_type=jnp.float32) + b
        if i < len(params) - 1:
            h = jnp.maximum(z, 0.0).astype(jnp.bfloat16)
    return jax.nn.log_softmax(z, axis=1)


if __name__ == "__main__":
    image_size = 64          # e.g. 8x8 "images"
    batch = 8

    key = jax.random.PRNGKey(0)
    key, kx = jax.random.split(key)
    x = jax.random.normal(kx, (batch, 1, 8, 8), jnp.float32)  # NCHW-like input

    params = init_params(jax.random.PRNGKey(0), image_size)

    fwd = jax.jit(functools.partial(model_d_forward, image_size=image_size))
    out = fwd(x, params)
    jax.block_until_ready(out)

    ref = reference_forward(x, params, image_size)
    assert out.shape == (batch, 10)
    assert jnp.allclose(out, ref, atol=1e-4, rtol=1e-4), "mismatch vs reference"
    # rows of log-probs should exp-sum to 1
    assert jnp.allclose(jnp.sum(jnp.exp(out), axis=1), 1.0, atol=1e-4)

    print("KERNEL_OK")
</pallas_src>

<mosaic_0001>
module attributes {stable_mosaic.version = 11 : i64} {
  func.func @_mlp_kernel(%arg0: i32, %arg1: memref<16x64xbf16, #tpu.memory_space<vmem>>, %arg2: memref<64x128xbf16, #tpu.memory_space<vmem>>, %arg3: memref<5x128x128xbf16, #tpu.memory_space<vmem>>, %arg4: memref<6x128xf32, #tpu.memory_space<vmem>>, %arg5: memref<16x128xf32, #tpu.memory_space<vmem>>) attributes {dimension_semantics = [#tpu.dimension_semantics<parallel>], iteration_bounds = array<i64: 1>, scalar_prefetch = 0 : i64, scratch_operands = 0 : i64, tpu.core_type = #tpu.core_type<tc>, window_params = [{transform_indices = @transform_0, window_bounds = array<i64: 16, 64>}, {pipeline_mode = #tpu.pipeline_mode<synchronous>, transform_indices = @transform_1, window_bounds = array<i64: 64, 128>}, {pipeline_mode = #tpu.pipeline_mode<synchronous>, transform_indices = @transform_2, window_bounds = array<i64: 5, 128, 128>}, {pipeline_mode = #tpu.pipeline_mode<synchronous>, transform_indices = @transform_3, window_bounds = array<i64: 6, 128>}, {transform_indices = @transform_4, window_bounds = array<i64: 16, 128>}]} {
    %c0 = arith.constant 0 : index
    %c0_0 = arith.constant 0 : index
    %0 = vector.load %arg1[%c0, %c0_0] : memref<16x64xbf16, #tpu.memory_space<vmem>>, vector<16x64xbf16>
    %c0_1 = arith.constant 0 : index
    %c0_2 = arith.constant 0 : index
    %1 = vector.load %arg2[%c0_1, %c0_2] : memref<64x128xbf16, #tpu.memory_space<vmem>>, vector<64x128xbf16>
    %cst = arith.constant dense<0.000000e+00> : vector<16x128xf32>
    %2 = tpu.matmul %0, %1, %cst {dimension_numbers = #tpu.dot_dimension_numbers<[1], [0], [0], [1], [0, 0, 1, 1], [], []>} : vector<16x64xbf16>, vector<64x128xbf16>, vector<16x128xf32> -> vector<16x128xf32>
    %c0_3 = arith.constant 0 : index
    %c0_4 = arith.constant 0 : index
    %3 = vector.load %arg4[%c0_3, %c0_4] : memref<6x128xf32, #tpu.memory_space<vmem>>, vector<1x128xf32>
    %4 = vector.shape_cast %3 : vector<1x128xf32> to vector<128xf32>
    %5 = vector.shape_cast %4 : vector<128xf32> to vector<1x128xf32>
    %6 = vector.broadcast %5 : vector<1x128xf32> to vector<16x128xf32>
    %7 = arith.addf %2, %6 : vector<16x128xf32>
    %cst_5 = arith.constant 0.000000e+00 : f32
    %8 = vector.broadcast %cst_5 : f32 to vector<16x128xf32>
    %9 = arith.maximumf %7, %8 : vector<16x128xf32>
    %10 = arith.truncf %9 : vector<16x128xf32> to vector<16x128xbf16>
    %c0_6 = arith.constant 0 : index
    %c0_7 = arith.constant 0 : index
    %c0_8 = arith.constant 0 : index
    %11 = vector.load %arg3[%c0_6, %c0_7, %c0_8] : memref<5x128x128xbf16, #tpu.memory_space<vmem>>, vector<1x128x128xbf16>
    %12 = vector.shape_cast %11 : vector<1x128x128xbf16> to vector<128x128xbf16>
    %cst_9 = arith.constant dense<0.000000e+00> : vector<16x128xf32>
    %13 = tpu.matmul %10, %12, %cst_9 {dimension_numbers = #tpu.dot_dimension_numbers<[1], [0], [0], [1], [0, 0, 1, 1], [], []>} : vector<16x128xbf16>, vector<128x128xbf16>, vector<16x128xf32> -> vector<16x128xf32>
    %c1 = arith.constant 1 : index
    %c0_10 = arith.constant 0 : index
    %14 = vector.load %arg4[%c1, %c0_10] : memref<6x128xf32, #tpu.memory_space<vmem>>, vector<1x128xf32>
    %15 = vector.shape_cast %14 : vector<1x128xf32> to vector<128xf32>
    %16 = vector.shape_cast %15 : vector<128xf32> to vector<1x128xf32>
    %17 = vector.broadcast %16 : vector<1x128xf32> to vector<16x128xf32>
    %18 = arith.addf %13, %17 : vector<16x128xf32>
    %cst_11 = arith.constant 0.000000e+00 : f32
    %19 = vector.broadcast %cst_11 : f32 to vector<16x128xf32>
    %20 = arith.maximumf %18, %19 : vector<16x128xf32>
    %21 = arith.truncf %20 : vector<16x128xf32> to vector<16x128xbf16>
    %c1_12 = arith.constant 1 : index
    %c0_13 = arith.constant 0 : index
    %c0_14 = arith.constant 0 : index
    %22 = vector.load %arg3[%c1_12, %c0_13, %c0_14] : memref<5x128x128xbf16, #tpu.memory_space<vmem>>, vector<1x128x128xbf16>
    %23 = vector.shape_cast %22 : vector<1x128x128xbf16> to vector<128x128xbf16>
    %cst_15 = arith.constant dense<0.000000e+00> : vector<16x128xf32>
    %24 = tpu.matmul %21, %23, %cst_15 {dimension_numbers = #tpu.dot_dimension_numbers<[1], [0], [0], [1], [0, 0, 1, 1], [], []>} : vector<16x128xbf16>, vector<128x128xbf16>, vector<16x128xf32> -> vector<16x128xf32>
    %c2 = arith.constant 2 : index
    %c0_16 = arith.constant 0 : index
    %25 = vector.load %arg4[%c2, %c0_16] : memref<6x128xf32, #tpu.memory_space<vmem>>, vector<1x128xf32>
    %26 = vector.shape_cast %25 : vector<1x128xf32> to vector<128xf32>
    %27 = vector.shape_cast %26 : vector<128xf32> to vector<1x128xf32>
    %28 = vector.broadcast %27 : vector<1x128xf32> to vector<16x128xf32>
    %29 = arith.addf %24, %28 : vector<16x128xf32>
    %cst_17 = arith.constant 0.000000e+00 : f32
    %30 = vector.broadcast %cst_17 : f32 to vector<16x128xf32>
    %31 = arith.maximumf %29, %30 : vector<16x128xf32>
    %32 = arith.truncf %31 : vector<16x128xf32> to vector<16x128xbf16>
    %c2_18 = arith.constant 2 : index
    %c0_19 = arith.constant 0 : index
    %c0_20 = arith.constant 0 : index
    %33 = vector.load %arg3[%c2_18, %c0_19, %c0_20] : memref<5x128x128xbf16, #tpu.memory_space<vmem>>, vector<1x128x128xbf16>
    %34 = vector.shape_cast %33 : vector<1x128x128xbf16> to vector<128x128xbf16>
    %cst_21 = arith.constant dense<0.000000e+00> : vector<16x128xf32>
    %35 = tpu.matmul %32, %34, %cst_21 {dimension_numbers = #tpu.dot_dimension_numbers<[1], [0], [0], [1], [0, 0, 1, 1], [], []>} : vector<16x128xbf16>, vector<128x128xbf16>, vector<16x128xf32> -> vector<16x128xf32>
    %c3 = arith.constant 3 : index
    %c0_22 = arith.constant 0 : index
    %36 = vector.load %arg4[%c3, %c0_22] : memref<6x128xf32, #tpu.memory_space<vmem>>, vector<1x128xf32>
    %37 = vector.shape_cast %36 : vector<1x128xf32> to vector<128xf32>
    %38 = vector.shape_cast %37 : vector<128xf32> to vector<1x128xf32>
    %39 = vector.broadcast %38 : vector<1x128xf32> to vector<16x128xf32>
    %40 = arith.addf %35, %39 : vector<16x128xf32>
    %cst_23 = arith.constant 0.000000e+00 : f32
    %41 = vector.broadcast %cst_23 : f32 to vector<16x128xf32>
    %42 = arith.maximumf %40, %41 : vector<16x128xf32>
    %43 = arith.truncf %42 : vector<16x128xf32> to vector<16x128xbf16>
    %c3_24 = arith.constant 3 : index
    %c0_25 = arith.constant 0 : index
    %c0_26 = arith.constant 0 : index
    %44 = vector.load %arg3[%c3_24, %c0_25, %c0_26] : memref<5x128x128xbf16, #tpu.memory_space<vmem>>, vector<1x128x128xbf16>
    %45 = vector.shape_cast %44 : vector<1x128x128xbf16> to vector<128x128xbf16>
    %cst_27 = arith.constant dense<0.000000e+00> : vector<16x128xf32>
    %46 = tpu.matmul %43, %45, %cst_27 {dimension_numbers = #tpu.dot_dimension_numbers<[1], [0], [0], [1], [0, 0, 1, 1], [], []>} : vector<16x128xbf16>, vector<128x128xbf16>, vector<16x128xf32> -> vector<16x128xf32>
    %c4 = arith.constant 4 : index
    %c0_28 = arith.constant 0 : index
    %47 = vector.load %arg4[%c4, %c0_28] : memref<6x128xf32, #tpu.memory_space<vmem>>, vector<1x128xf32>
    %48 = vector.shape_cast %47 : vector<1x128xf32> to vector<128xf32>
    %49 = vector.shape_cast %48 : vector<128xf32> to vector<1x128xf32>
    %50 = vector.broadcast %49 : vector<1x128xf32> to vector<16x128xf32>
    %51 = arith.addf %46, %50 : vector<16x128xf32>
    %cst_29 = arith.constant 0.000000e+00 : f32
    %52 = vector.broadcast %cst_29 : f32 to vector<16x128xf32>
    %53 = arith.maximumf %51, %52 : vector<16x128xf32>
    %54 = arith.truncf %53 : vector<16x128xf32> to vector<16x128xbf16>
    %c4_30 = arith.constant 4 : index
    %c0_31 = arith.constant 0 : index
    %c0_32 = arith.constant 0 : index
    %55 = vector.load %arg3[%c4_30, %c0_31, %c0_32] : memref<5x128x128xbf16, #tpu.memory_space<vmem>>, vector<1x128x128xbf16>
    %56 = vector.shape_cast %55 : vector<1x128x128xbf16> to vector<128x128xbf16>
    %cst_33 = arith.constant dense<0.000000e+00> : vector<16x128xf32>
    %57 = tpu.matmul %54, %56, %cst_33 {dimension_numbers = #tpu.dot_dimension_numbers<[1], [0], [0], [1], [0, 0, 1, 1], [], []>} : vector<16x128xbf16>, vector<128x128xbf16>, vector<16x128xf32> -> vector<16x128xf32>
    %c5 = arith.constant 5 : index
    %c0_34 = arith.constant 0 : index
    %58 = vector.load %arg4[%c5, %c0_34] : memref<6x128xf32, #tpu.memory_space<vmem>>, vector<1x128xf32>
    %59 = vector.shape_cast %58 : vector<1x128xf32> to vector<128xf32>
    %60 = vector.shape_cast %59 : vector<128xf32> to vector<1x128xf32>
    %61 = vector.broadcast %60 : vector<1x128xf32> to vector<16x128xf32>
    %62 = arith.addf %57, %61 : vector<16x128xf32>
    %cst_35 = arith.constant dense<0xFF800000> : vector<16xf32>
    %63 = vector.multi_reduction <maximumf>, %62, %cst_35 [1] : vector<16x128xf32> to vector<16xf32>
    %64 = vector.shape_cast %63 : vector<16xf32> to vector<16x1xf32>
    %65 = vector.broadcast %64 : vector<16x1xf32> to vector<16x128xf32>
    %66 = arith.subf %62, %65 : vector<16x128xf32>
    %67 = math.exp %66 : vector<16x128xf32>
    %cst_36 = arith.constant dense<0.000000e+00> : vector<16xf32>
    %68 = vector.multi_reduction <add>, %67, %cst_36 [1] : vector<16x128xf32> to vector<16xf32>
    %69 = vector.shape_cast %68 : vector<16xf32> to vector<16x1xf32>
    %70 = math.log %69 : vector<16x1xf32>
    %71 = vector.broadcast %70 : vector<16x1xf32> to vector<16x128xf32>
    %72 = arith.subf %66, %71 : vector<16x128xf32>
    %c0_37 = arith.constant 0 : index
    %c0_38 = arith.constant 0 : index
    %73 = vector.load %arg5[%c0_37, %c0_38] : memref<16x128xf32, #tpu.memory_space<vmem>>, vector<16x128xf32>
    tpu.vector_store %arg5[%c0_37, %c0_38], %72 {strides = array<i32>} : memref<16x128xf32, #tpu.memory_space<vmem>>, vector<16x128xf32>,
    return
  }
  func.func @transform_0(%arg0: i32) -> (i32, i32) {
    %c0_i32 = arith.constant 0 : i32
    %c0_i32_0 = arith.constant 0 : i32
    return %arg0, %c0_i32 : i32, i32
  }
  func.func @transform_1(%arg0: i32) -> (i32, i32) {
    %c0_i32 = arith.constant 0 : i32
    %c0_i32_0 = arith.constant 0 : i32
    %c0_i32_1 = arith.constant 0 : i32
    return %c0_i32, %c0_i32_0 : i32, i32
  }
  func.func @transform_2(%arg0: i32) -> (i32, i32, i32) {
    %c0_i32 = arith.constant 0 : i32
    %c0_i32_0 = arith.constant 0 : i32
    %c0_i32_1 = arith.constant 0 : i32
    %c0_i32_2 = arith.constant 0 : i32
    return %c0_i32, %c0_i32_0, %c0_i32_1 : i32, i32, i32
  }
  func.func @transform_3(%arg0: i32) -> (i32, i32) {
    %c0_i32 = arith.constant 0 : i32
    %c0_i32_0 = arith.constant 0 : i32
    %c0_i32_1 = arith.constant 0 : i32
    return %c0_i32, %c0_i32_0 : i32, i32
  }
  func.func @transform_4(%arg0: i32) -> (i32, i32) {
    %c0_i32 = arith.constant 0 : i32
    %c0_i32_0 = arith.constant 0 : i32
    return %arg0, %c0_i32 : i32, i32
  }
}

</mosaic_0001>

<llo_original>
// kernel: model_d_forward.1
$region0: #{model_d_forward.1}
  #allocation0 [shape = 'u32[]', space=smem, size = 0x4, offset = 0x4, fixed_abs, tag = 'smem constant byte address 0x4 - core index']
  #allocation1 [shape = 'u32[144,128]{1,0:T(1,128)}', space=vmem, size = 0x12000, scoped, tag = 'internal scratch']
  %s0 = inlined_call_operand.vmem [shape: bf16[16,64], index: 0, kind: input, shape index: {}]
  %s1 = inlined_call_operand.vmem [shape: bf16[64,128], index: 1, kind: input, shape index: {}]
  %s2 = inlined_call_operand.vmem [shape: bf16[5,128,128], index: 2, kind: input, shape index: {}]
  %s3 = inlined_call_operand.vmem [shape: f32[6,128], index: 3, kind: input, shape index: {}]
  %s4 = inlined_call_operand.vmem [shape: f32[16,128], index: 4, kind: output, shape index: {}]
  %s5 = sld [smem:[#allocation0]]
  $region26: #{model_d_forward.1} parent=0
    _
  %s7 = ssub.s32 1, %s5
  %s8 = scalar_select 0, %s7, %s5
  // Predicated region
  $region2: #{model_d_forward.1} parent=0 // pred_check
    _
  $region3: #{model_d_forward.1} parent=0 // pred_check_branch
    %10 = sbr.rel (0) target = $region5
  $region4: #{model_d_forward.1} parent=0 // pred_region
    _
  $region5: #{model_d_forward.1} parent=0 // pred_fallthru
    _
  // Predicated region
  $region6: #{model_d_forward.1} parent=0 // pred_check
    _
  $region7: #{model_d_forward.1} parent=0 // pred_check_branch
    %12 = sbr.rel (0) target = $region9
  $region8: #{model_d_forward.1} parent=0 // pred_region
    _
  $region9: #{model_d_forward.1} parent=0 // pred_fallthru
    _
  // Predicated region
  $region10: #{model_d_forward.1} parent=0 // pred_check
    _
  $region11: #{model_d_forward.1} parent=0 // pred_check_branch
    %14 = sbr.rel (0) target = $region13
  $region12: #{model_d_forward.1} parent=0 // pred_region
    _
  $region13: #{model_d_forward.1} parent=0 // pred_fallthru
    _
  // Predicated region
  $region14: #{model_d_forward.1} parent=0 // pred_check
    _
  $region15: #{model_d_forward.1} parent=0 // pred_check_branch
    %16 = sbr.rel (0) target = $region17
  $region16: #{model_d_forward.1} parent=0 // pred_region
    _
  $region17: #{model_d_forward.1} parent=0 // pred_fallthru
    _
  %v18 = vld [vmem:[%s0] sm:$0xf]
  %v19 = vld [vmem:[%s0 + $0x4] sm:$0xf]
  %v20 = vld [vmem:[%s1] sm:$0xf]
  %v21 = vld [vmem:[%s1 + $0x4] sm:$0xf]
  %v22 = vld [vmem:[%s1 + $0x8] sm:$0xf]
  %v23 = vld [vmem:[%s1 + $0xc] sm:$0xf]
  %v24 = vld [vmem:[%s1 + $0x10] sm:$0xf]
  %v25 = vld [vmem:[%s1 + $0x14] sm:$0xf]
  %v26 = vld [vmem:[%s1 + $0x18] sm:$0xf]
  %v27 = vld [vmem:[%s1 + $0x1c] sm:$0xf]
  %v28 = vld [vmem:[%s3] sm:$0x1]
  %v29 = vlaneseq
  %v30 = vshrl.u32 %v29, 7
  %v31 = vsub.s32 0, %v30
  %v32 = vrot.slane %v28, %v31
  %v35 = vunpack.c.l.b16 %v18
  %v36 = vunpack.c.l.b16 %v19
  %v37 = vpack.c.b16 %v36, %v35
  %v46 = vunpack.c.l.b16 %v20
  %v47 = vunpack.c.l.b16 %v21
  %v48 = vunpack.c.l.b16 %v22
  %v49 = vunpack.c.l.b16 %v23
  %v50 = vunpack.c.l.b16 %v24
  %v51 = vunpack.c.l.b16 %v25
  %v52 = vunpack.c.l.b16 %v26
  %v53 = vunpack.c.l.b16 %v27
  %v54 = vpack.c.b16 %v47, %v46
  %v55 = vpack.c.b16 %v49, %v48
  %v56 = vpack.c.b16 %v51, %v50
  %v57 = vpack.c.b16 %v53, %v52
  %vm62 = vcmask 523264
  %v64 = vsel %vm62, %v37, 0
  %66 = vmatprep.subr.bf16.mxu0 0
  %67 = vmatpush1.bf16.msra.mxu0 %v54
  %68 = vmatprep.subr.bf16.mxu0 0
  %69 = vmatpush1.bf16.msra.mxu0 %v55
  %70 = vmatprep.subr.bf16.mxu0 0
  %71 = vmatpush1.bf16.msra.mxu0 %v56
  %72 = vmatprep.subr.bf16.mxu0 0
  %73 = vmatpush1.bf16.msra.mxu0 %v57
  %74 = vmatprep.subr.bf16.mxu0 0
  %75 = vmatpush1.bf16.msra.mxu0 0
  %76 = vmatprep.subr.bf16.mxu0 0
  %77 = vmatpush1.bf16.msra.mxu0 0
  %78 = vmatprep.subr.bf16.mxu0 0
  %79 = vmatpush1.bf16.msra.mxu0 0
  %80 = vmatprep.subr.bf16.mxu0 0
  %81 = vmatpush1.bf16.msra.mxu0 0
  %82 = vmatprep.subr.bf16.mxu0 0
  %83 = vmatpush1.bf16.msra.mxu0 0
  %84 = vmatprep.subr.bf16.mxu0 0
  %85 = vmatpush1.bf16.msra.mxu0 0
  %86 = vmatprep.subr.bf16.mxu0 0
  %87 = vmatpush1.bf16.msra.mxu0 0
  %88 = vmatprep.subr.bf16.mxu0 0
  %89 = vmatpush1.bf16.msra.mxu0 0
  %90 = vmatprep.subr.bf16.mxu0 0
  %91 = vmatpush1.bf16.msra.mxu0 0
  %92 = vmatprep.subr.bf16.mxu0 0
  %93 = vmatpush1.bf16.msra.mxu0 0
  %94 = vmatprep.subr.bf16.mxu0 0
  %95 = vmatpush1.bf16.msra.mxu0 0
  %96 = vmatprep.subr.bf16.mxu0 0
  %97 = vmatpush1.bf16.msra.mxu0 0
  %98 = vmatprep.mubr.bf16.mxu0 0
  %99 = vmatmul.mubr.bf16.gmra.mrb[0].mxu0 %v64
  %v100 = vpop.f32.mrb[0].mxu0
  %v101 = vadd.f32 %v32, %v100
  %v102 = vpop.f32.mrb[0].mxu0
  %v103 = vpop.f32.mrb[0].mxu0
  %v104 = vadd.f32 %v32, %v103
  %v105 = vpop.f32.mrb[0].mxu0
  %106 = vdwg.mxu0
  %v107 = vmax.f32 %v101, 0.0
  %v108 = vmax.f32 %v104, 0.0
  %v109 = vpack.c.bf16 %v108, %v107
  %v110 = vld [vmem:[%s2] sm:$0xf]
  %v111 = vld [vmem:[%s2 + $0x4] sm:$0xf]
  %v112 = vld [vmem:[%s2 + $0x8] sm:$0xf]
  %v113 = vld [vmem:[%s2 + $0xc] sm:$0xf]
  %v114 = vld [vmem:[%s2 + $0x10] sm:$0xf]
  %v115 = vld [vmem:[%s2 + $0x14] sm:$0xf]
  %v116 = vld [vmem:[%s2 + $0x18] sm:$0xf]
  %v117 = vld [vmem:[%s2 + $0x1c] sm:$0xf]
  %v118 = vld [vmem:[%s2 + $0x20] sm:$0xf]
  %v119 = vld [vmem:[%s2 + $0x24] sm:$0xf]
  %v120 = vld [vmem:[%s2 + $0x28] sm:$0xf]
  %v121 = vld [vmem:[%s2 + $0x2c] sm:$0xf]
  %v122 = vld [vmem:[%s2 + $0x30] sm:$0xf]
  %v123 = vld [vmem:[%s2 + $0x34] sm:$0xf]
  %v124 = vld [vmem:[%s2 + $0x38] sm:$0xf]
  %v125 = vld [vmem:[%s2 + $0x3c] sm:$0xf]
  %v126 = vld [vmem:[%s3 + $0x1] sm:$0x1]
  %v127 = vlaneseq
  %v128 = vshrl.u32 %v127, 7
  %v129 = vsub.s32 0, %v128
  %v130 = vrot.slane %v126, %v129
  %v147 = vunpack.c.l.b16 %v110
  %v148 = vunpack.c.l.b16 %v111
  %v149 = vunpack.c.l.b16 %v112
  %v150 = vunpack.c.l.b16 %v113
  %v151 = vunpack.c.l.b16 %v114
  %v152 = vunpack.c.l.b16 %v115
  %v153 = vunpack.c.l.b16 %v116
  %v154 = vunpack.c.l.b16 %v117
  %v155 = vunpack.c.l.b16 %v118
  %v156 = vunpack.c.l.b16 %v119
  %v157 = vunpack.c.l.b16 %v120
  %v158 = vunpack.c.l.b16 %v121
  %v159 = vunpack.c.l.b16 %v122
  %v160 = vunpack.c.l.b16 %v123
  %v161 = vunpack.c.l.b16 %v124
  %v162 = vunpack.c.l.b16 %v125
  %v163 = vpack.c.b16 %v148, %v147
  %v164 = vpack.c.b16 %v150, %v149
  %v165 = vpack.c.b16 %v152, %v151
  %v166 = vpack.c.b16 %v154, %v153
  %v167 = vpack.c.b16 %v156, %v155
  %v168 = vpack.c.b16 %v158, %v157
  %v169 = vpack.c.b16 %v160, %v159
  %v170 = vpack.c.b16 %v162, %v161
  %179 = vmatprep.subr.bf16.mxu0 0
  %180 = vmatpush1.bf16.msra.mxu0 %v163
  %181 = vmatprep.subr.bf16.mxu0 0
  %182 = vmatpush1.bf16.msra.mxu0 %v164
  %183 = vmatprep.subr.bf16.mxu0 0
  %184 = vmatpush1.bf16.msra.mxu0 %v165
  %185 = vmatprep.subr.bf16.mxu0 0
  %186 = vmatpush1.bf16.msra.mxu0 %v166
  %187 = vmatprep.subr.bf16.mxu0 0
  %188 = vmatpush1.bf16.msra.mxu0 %v167
  %189 = vmatprep.subr.bf16.mxu0 0
  %190 = vmatpush1.bf16.msra.mxu0 %v168
  %191 = vmatprep.subr.bf16.mxu0 0
  %192 = vmatpush1.bf16.msra.mxu0 %v169
  %193 = vmatprep.subr.bf16.mxu0 0
  %194 = vmatpush1.bf16.msra.mxu0 %v170
  %195 = vmatprep.subr.bf16.mxu0 0
  %196 = vmatpush1.bf16.msra.mxu0 0
  %197 = vmatprep.subr.bf16.mxu0 0
  %198 = vmatpush1.bf16.msra.mxu0 0
  %199 = vmatprep.subr.bf16.mxu0 0
  %200 = vmatpush1.bf16.msra.mxu0 0
  %201 = vmatprep.subr.bf16.mxu0 0
  %202 = vmatpush1.bf16.msra.mxu0 0
  %203 = vmatprep.subr.bf16.mxu0 0
  %204 = vmatpush1.bf16.msra.mxu0 0
  %205 = vmatprep.subr.bf16.mxu0 0
  %206 = vmatpush1.bf16.msra.mxu0 0
  %207 = vmatprep.subr.bf16.mxu0 0
  %208 = vmatpush1.bf16.msra.mxu0 0
  %209 = vmatprep.subr.bf16.mxu0 0
  %210 = vmatpush1.bf16.msra.mxu0 0
  %211 = vmatprep.mubr.bf16.mxu0 0
  %212 = vmatmul.mubr.bf16.gmra.mrb[0].mxu0 %v109
  %v213 = vpop.f32.mrb[0].mxu0
  %v214 = vadd.f32 %v130, %v213
  %v215 = vpop.f32.mrb[0].mxu0
  %v216 = vpop.f32.mrb[0].mxu0
  %v217 = vadd.f32 %v130, %v216
  %v218 = vpop.f32.mrb[0].mxu0
  %219 = vdwg.mxu0
  %v220 = vmax.f32 %v214, 0.0
  %v221 = vmax.f32 %v217, 0.0
  %v222 = vpack.c.bf16 %v221, %v220
  %s223 = scalar_lea.vmem %s2, 64
  %v224 = vld [vmem:[%s223] sm:$0xf]
  %v225 = vld [vmem:[%s223 + $0x4] sm:$0xf]
  %v226 = vld [vmem:[%s223 + $0x8] sm:$0xf]
  %v227 = vld [vmem:[%s223 + $0xc] sm:$0xf]
  %v228 = vld [vmem:[%s223 + $0x10] sm:$0xf]
  %v229 = vld [vmem:[%s223 + $0x14] sm:$0xf]
  %v230 = vld [vmem:[%s223 + $0x18] sm:$0xf]
  %v231 = vld [vmem:[%s223 + $0x1c] sm:$0xf]
  %v232 = vld [vmem:[%s223 + $0x20] sm:$0xf]
  %v233 = vld [vmem:[%s223 + $0x24] sm:$0xf]
  %v234 = vld [vmem:[%s223 + $0x28] sm:$0xf]
  %v235 = vld [vmem:[%s223 + $0x2c] sm:$0xf]
  %v236 = vld [vmem:[%s223 + $0x30] sm:$0xf]
  %v237 = vld [vmem:[%s223 + $0x34] sm:$0xf]
  %v238 = vld [vmem:[%s223 + $0x38] sm:$0xf]
  %v239 = vld [vmem:[%s223 + $0x3c] sm:$0xf]
  %v240 = vld [vmem:[%s3 + $0x2] sm:$0x1]
  %v241 = vlaneseq
  %v242 = vshrl.u32 %v241, 7
  %v243 = vsub.s32 0, %v242
  %v244 = vrot.slane %v240, %v243
  %v261 = vunpack.c.l.b16 %v224
  %v262 = vunpack.c.l.b16 %v225
  %v263 = vunpack.c.l.b16 %v226
  %v264 = vunpack.c.l.b16 %v227
  %v265 = vunpack.c.l.b16 %v228
  %v266 = vunpack.c.l.b16 %v229
  %v267 = vunpack.c.l.b16 %v230
  %v268 = vunpack.c.l.b16 %v231
  %v269 = vunpack.c.l.b16 %v232
  %v270 = vunpack.c.l.b16 %v233
  %v271 = vunpack.c.l.b16 %v234
  %v272 = vunpack.c.l.b16 %v235
  %v273 = vunpack.c.l.b16 %v236
  %v274 = vunpack.c.l.b16 %v237
  %v275 = vunpack.c.l.b16 %v238
  %v276 = vunpack.c.l.b16 %v239
  %v277 = vpack.c.b16 %v262, %v261
  %v278 = vpack.c.b16 %v264, %v263
  %v279 = vpack.c.b16 %v266, %v265
  %v280 = vpack.c.b16 %v268, %v267
  %v281 = vpack.c.b16 %v270, %v269
  %v282 = vpack.c.b16 %v272, %v271
  %v283 = vpack.c.b16 %v274, %v273
  %v284 = vpack.c.b16 %v276, %v275
  %293 = vmatprep.subr.bf16.mxu0 0
  %294 = vmatpush1.bf16.msra.mxu0 %v277
  %295 = vmatprep.subr.bf16.mxu0 0
  %296 = vmatpush1.bf16.msra.mxu0 %v278
  %297 = vmatprep.subr.bf16.mxu0 0
  %298 = vmatpush1.bf16.msra.mxu0 %v279
  %299 = vmatprep.subr.bf16.mxu0 0
  %300 = vmatpush1.bf16.msra.mxu0 %v280
  %301 = vmatprep.subr.bf16.mxu0 0
  %302 = vmatpush1.bf16.msra.mxu0 %v281
  %303 = vmatprep.subr.bf16.mxu0 0
  %304 = vmatpush1.bf16.msra.mxu0 %v282
  %305 = vmatprep.subr.bf16.mxu0 0
  %306 = vmatpush1.bf16.msra.mxu0 %v283
  %307 = vmatprep.subr.bf16.mxu0 0
  %308 = vmatpush1.bf16.msra.mxu0 %v284
  %309 = vmatprep.subr.bf16.mxu0 0
  %310 = vmatpush1.bf16.msra.mxu0 0
  %311 = vmatprep.subr.bf16.mxu0 0
  %312 = vmatpush1.bf16.msra.mxu0 0
  %313 = vmatprep.subr.bf16.mxu0 0
  %314 = vmatpush1.bf16.msra.mxu0 0
  %315 = vmatprep.subr.bf16.mxu0 0
  %316 = vmatpush1.bf16.msra.mxu0 0
  %317 = vmatprep.subr.bf16.mxu0 0
  %318 = vmatpush1.bf16.msra.mxu0 0
  %319 = vmatprep.subr.bf16.mxu0 0
  %320 = vmatpush1.bf16.msra.mxu0 0
  %321 = vmatprep.subr.bf16.mxu0 0
  %322 = vmatpush1.bf16.msra.mxu0 0
  %323 = vmatprep.subr.bf16.mxu0 0
  %324 = vmatpush1.bf16.msra.mxu0 0
  %325 = vmatprep.mubr.bf16.mxu0 0
  %326 = vmatmul.mubr.bf16.gmra.mrb[0].mxu0 %v222
  %v327 = vpop.f32.mrb[0].mxu0
  %v328 = vadd.f32 %v244, %v327
  %v329 = vpop.f32.mrb[0].mxu0
  %v330 = vpop.f32.mrb[0].mxu0
  %v331 = vadd.f32 %v244, %v330
  %v332 = vpop.f32.mrb[0].mxu0
  %333 = vdwg.mxu0
  %v334 = vmax.f32 %v328, 0.0
  %v335 = vmax.f32 %v331, 0.0
  %v336 = vpack.c.bf16 %v335, %v334
  %s337 = scalar_lea.vmem %s2, 128
  %v338 = vld [vmem:[%s337] sm:$0xf]
  %v339 = vld [vmem:[%s337 + $0x4] sm:$0xf]
  %v340 = vld [vmem:[%s337 + $0x8] sm:$0xf]
  %v341 = vld [vmem:[%s337 + $0xc] sm:$0xf]
  %v342 = vld [vmem:[%s337 + $0x10] sm:$0xf]
  %v343 = vld [vmem:[%s337 + $0x14] sm:$0xf]
  %v344 = vld [vmem:[%s337 + $0x18] sm:$0xf]
  %v345 = vld [vmem:[%s337 + $0x1c] sm:$0xf]
  %v346 = vld [vmem:[%s337 + $0x20] sm:$0xf]
  %v347 = vld [vmem:[%s337 + $0x24] sm:$0xf]
  %v348 = vld [vmem:[%s337 + $0x28] sm:$0xf]
  %v349 = vld [vmem:[%s337 + $0x2c] sm:$0xf]
  %v350 = vld [vmem:[%s337 + $0x30] sm:$0xf]
  %v351 = vld [vmem:[%s337 + $0x34] sm:$0xf]
  %v352 = vld [vmem:[%s337 + $0x38] sm:$0xf]
  %v353 = vld [vmem:[%s337 + $0x3c] sm:$0xf]
  %v354 = vld [vmem:[%s3 + $0x3] sm:$0x1]
  %v355 = vlaneseq
  %v356 = vshrl.u32 %v355, 7
  %v357 = vsub.s32 0, %v356
  %v358 = vrot.slane %v354, %v357
  %v375 = vunpack.c.l.b16 %v338
  %v376 = vunpack.c.l.b16 %v339
  %v377 = vunpack.c.l.b16 %v340
  %v378 = vunpack.c.l.b16 %v341
  %v379 = vunpack.c.l.b16 %v342
  %v380 = vunpack.c.l.b16 %v343
  %v381 = vunpack.c.l.b16 %v344
  %v382 = vunpack.c.l.b16 %v345
  %v383 = vunpack.c.l.b16 %v346
  %v384 = vunpack.c.l.b16 %v347
  %v385 = vunpack.c.l.b16 %v348
  %v386 = vunpack.c.l.b16 %v349
  %v387 = vunpack.c.l.b16 %v350
  %v388 = vunpack.c.l.b16 %v351
  %v389 = vunpack.c.l.b16 %v352
  %v390 = vunpack.c.l.b16 %v353
  %v391 = vpack.c.b16 %v376, %v375
  %v392 = vpack.c.b16 %v378, %v377
  %v393 = vpack.c.b16 %v380, %v379
  %v394 = vpack.c.b16 %v382, %v381
  %v395 = vpack.c.b16 %v384, %v383
  %v396 = vpack.c.b16 %v386, %v385
  %v397 = vpack.c.b16 %v388, %v387
  %v398 = vpack.c.b16 %v390, %v389
  %407 = vmatprep.subr.bf16.mxu0 0
  %408 = vmatpush1.bf16.msra.mxu0 %v391
  %409 = vmatprep.subr.bf16.mxu0 0
  %410 = vmatpush1.bf16.msra.mxu0 %v392
  %411 = vmatprep.subr.bf16.mxu0 0
  %412 = vmatpush1.bf16.msra.mxu0 %v393
  %413 = vmatprep.subr.bf16.mxu0 0
  %414 = vmatpush1.bf16.msra.mxu0 %v394
  %415 = vmatprep.subr.bf16.mxu0 0
  %416 = vmatpush1.bf16.msra.mxu0 %v395
  %417 = vmatprep.subr.bf16.mxu0 0
  %418 = vmatpush1.bf16.msra.mxu0 %v396
  %419 = vmatprep.subr.bf16.mxu0 0
  %420 = vmatpush1.bf16.msra.mxu0 %v397
  %421 = vmatprep.subr.bf16.mxu0 0
  %422 = vmatpush1.bf16.msra.mxu0 %v398
  %423 = vmatprep.subr.bf16.mxu0 0
  %424 = vmatpush1.bf16.msra.mxu0 0
  %425 = vmatprep.subr.bf16.mxu0 0
  %426 = vmatpush1.bf16.msra.mxu0 0
  %427 = vmatprep.subr.bf16.mxu0 0
  %428 = vmatpush1.bf16.msra.mxu0 0
  %429 = vmatprep.subr.bf16.mxu0 0
  %430 = vmatpush1.bf16.msra.mxu0 0
  %431 = vmatprep.subr.bf16.mxu0 0
  %432 = vmatpush1.bf16.msra.mxu0 0
  %433 = vmatprep.subr.bf16.mxu0 0
  %434 = vmatpush1.bf16.msra.mxu0 0
  %435 = vmatprep.subr.bf16.mxu0 0
  %436 = vmatpush1.bf16.msra.mxu0 0
  %437 = vmatprep.subr.bf16.mxu0 0
  %438 = vmatpush1.bf16.msra.mxu0 0
  %439 = vmatprep.mubr.bf16.mxu0 0
  %440 = vmatmul.mubr.bf16.gmra.mrb[0].mxu0 %v336
  %v441 = vpop.f32.mrb[0].mxu0
  %v442 = vadd.f32 %v358, %v441
  %v443 = vpop.f32.mrb[0].mxu0
  %v444 = vpop.f32.mrb[0].mxu0
  %v445 = vadd.f32 %v358, %v444
  %v446 = vpop.f32.mrb[0].mxu0
  %447 = vdwg.mxu0
  %v448 = vmax.f32 %v442, 0.0
  %v449 = vmax.f32 %v445, 0.0
  %v450 = vpack.c.bf16 %v449, %v448
  %s451 = scalar_lea.vmem %s2, 192
  %v452 = vld [vmem:[%s451] sm:$0xf]
  %v453 = vld [vmem:[%s451 + $0x4] sm:$0xf]
  %v454 = vld [vmem:[%s451 + $0x8] sm:$0xf]
  %v455 = vld [vmem:[%s451 + $0xc] sm:$0xf]
  %v456 = vld [vmem:[%s451 + $0x10] sm:$0xf]
  %v457 = vld [vmem:[%s451 + $0x14] sm:$0xf]
  %v458 = vld [vmem:[%s451 + $0x18] sm:$0xf]
  %v459 = vld [vmem:[%s451 + $0x1c] sm:$0xf]
  %v460 = vld [vmem:[%s451 + $0x20] sm:$0xf]
  %v461 = vld [vmem:[%s451 + $0x24] sm:$0xf]
  %v462 = vld [vmem:[%s451 + $0x28] sm:$0xf]
  %v463 = vld [vmem:[%s451 + $0x2c] sm:$0xf]
  %v464 = vld [vmem:[%s451 + $0x30] sm:$0xf]
  %v465 = vld [vmem:[%s451 + $0x34] sm:$0xf]
  %v466 = vld [vmem:[%s451 + $0x38] sm:$0xf]
  %v467 = vld [vmem:[%s451 + $0x3c] sm:$0xf]
  %v468 = vld [vmem:[%s3 + $0x4] sm:$0x1]
  %v469 = vlaneseq
  %v470 = vshrl.u32 %v469, 7
  %v471 = vsub.s32 0, %v470
  %v472 = vrot.slane %v468, %v471
  %v489 = vunpack.c.l.b16 %v452
  %v490 = vunpack.c.l.b16 %v453
  %v491 = vunpack.c.l.b16 %v454
  %v492 = vunpack.c.l.b16 %v455
  %v493 = vunpack.c.l.b16 %v456
  %v494 = vunpack.c.l.b16 %v457
  %v495 = vunpack.c.l.b16 %v458
  %v496 = vunpack.c.l.b16 %v459
  %v497 = vunpack.c.l.b16 %v460
  %v498 = vunpack.c.l.b16 %v461
  %v499 = vunpack.c.l.b16 %v462
  %v500 = vunpack.c.l.b16 %v463
  %v501 = vunpack.c.l.b16 %v464
  %v502 = vunpack.c.l.b16 %v465
  %v503 = vunpack.c.l.b16 %v466
  %v504 = vunpack.c.l.b16 %v467
  %v505 = vpack.c.b16 %v490, %v489
  %v506 = vpack.c.b16 %v492, %v491
  %v507 = vpack.c.b16 %v494, %v493
  %v508 = vpack.c.b16 %v496, %v495
  %v509 = vpack.c.b16 %v498, %v497
  %v510 = vpack.c.b16 %v500, %v499
  %v511 = vpack.c.b16 %v502, %v501
  %v512 = vpack.c.b16 %v504, %v503
  %521 = vmatprep.subr.bf16.mxu0 0
  %522 = vmatpush1.bf16.msra.mxu0 %v505
  %523 = vmatprep.subr.bf16.mxu0 0
  %524 = vmatpush1.bf16.msra.mxu0 %v506
  %525 = vmatprep.subr.bf16.mxu0 0
  %526 = vmatpush1.bf16.msra.mxu0 %v507
  %527 = vmatprep.subr.bf16.mxu0 0
  %528 = vmatpush1.bf16.msra.mxu0 %v508
  %529 = vmatprep.subr.bf16.mxu0 0
  %530 = vmatpush1.bf16.msra.mxu0 %v509
  %531 = vmatprep.subr.bf16.mxu0 0
  %532 = vmatpush1.bf16.msra.mxu0 %v510
  %533 = vmatprep.subr.bf16.mxu0 0
  %534 = vmatpush1.bf16.msra.mxu0 %v511
  %535 = vmatprep.subr.bf16.mxu0 0
  %536 = vmatpush1.bf16.msra.mxu0 %v512
  %537 = vmatprep.subr.bf16.mxu0 0
  %538 = vmatpush1.bf16.msra.mxu0 0
  %539 = vmatprep.subr.bf16.mxu0 0
  %540 = vmatpush1.bf16.msra.mxu0 0
  %541 = vmatprep.subr.bf16.mxu0 0
  %542 = vmatpush1.bf16.msra.mxu0 0
  %543 = vmatprep.subr.bf16.mxu0 0
  %544 = vmatpush1.bf16.msra.mxu0 0
  %545 = vmatprep.subr.bf16.mxu0 0
  %546 = vmatpush1.bf16.msra.mxu0 0
  %547 = vmatprep.subr.bf16.mxu0 0
  %548 = vmatpush1.bf16.msra.mxu0 0
  %549 = vmatprep.subr.bf16.mxu0 0
  %550 = vmatpush1.bf16.msra.mxu0 0
  %551 = vmatprep.subr.bf16.mxu0 0
  %552 = vmatpush1.bf16.msra.mxu0 0
  %553 = vmatprep.mubr.bf16.mxu0 0
  %554 = vmatmul.mubr.bf16.gmra.mrb[0].mxu0 %v450
  %v555 = vpop.f32.mrb[0].mxu0
  %v556 = vadd.f32 %v472, %v555
  %v557 = vpop.f32.mrb[0].mxu0
  %v558 = vpop.f32.mrb[0].mxu0
  %v559 = vadd.f32 %v472, %v558
  %v560 = vpop.f32.mrb[0].mxu0
  %561 = vdwg.mxu0
  %v562 = vmax.f32 %v556, 0.0
  %v563 = vmax.f32 %v559, 0.0
  %v564 = vpack.c.bf16 %v563, %v562
  %s565 = scalar_lea.vmem %s2, 256
  %v566 = vld [vmem:[%s565] sm:$0xf]
  %v567 = vld [vmem:[%s565 + $0x4] sm:$0xf]
  %v568 = vld [vmem:[%s565 + $0x8] sm:$0xf]
  %v569 = vld [vmem:[%s565 + $0xc] sm:$0xf]
  %v570 = vld [vmem:[%s565 + $0x10] sm:$0xf]
  %v571 = vld [vmem:[%s565 + $0x14] sm:$0xf]
  %v572 = vld [vmem:[%s565 + $0x18] sm:$0xf]
  %v573 = vld [vmem:[%s565 + $0x1c] sm:$0xf]
  %v574 = vld [vmem:[%s565 + $0x20] sm:$0xf]
  %v575 = vld [vmem:[%s565 + $0x24] sm:$0xf]
  %v576 = vld [vmem:[%s565 + $0x28] sm:$0xf]
  %v577 = vld [vmem:[%s565 + $0x2c] sm:$0xf]
  %v578 = vld [vmem:[%s565 + $0x30] sm:$0xf]
  %v579 = vld [vmem:[%s565 + $0x34] sm:$0xf]
  %v580 = vld [vmem:[%s565 + $0x38] sm:$0xf]
  %v581 = vld [vmem:[%s565 + $0x3c] sm:$0xf]
  %v582 = vld [vmem:[%s3 + $0x5] sm:$0x1]
  %v583 = vlaneseq
  %v584 = vshrl.u32 %v583, 7
  %v585 = vsub.s32 0, %v584
  %v586 = vrot.slane %v582, %v585
  %v603 = vunpack.c.l.b16 %v566
  %v604 = vunpack.c.l.b16 %v567
  %v605 = vunpack.c.l.b16 %v568
  %v606 = vunpack.c.l.b16 %v569
  %v607 = vunpack.c.l.b16 %v570
  %v608 = vunpack.c.l.b16 %v571
  %v609 = vunpack.c.l.b16 %v572
  %v610 = vunpack.c.l.b16 %v573
  %v611 = vunpack.c.l.b16 %v574
  %v612 = vunpack.c.l.b16 %v575
  %v613 = vunpack.c.l.b16 %v576
  %v614 = vunpack.c.l.b16 %v577
  %v615 = vunpack.c.l.b16 %v578
  %v616 = vunpack.c.l.b16 %v579
  %v617 = vunpack.c.l.b16 %v580
  %v618 = vunpack.c.l.b16 %v581
  %v619 = vpack.c.b16 %v604, %v603
  %v620 = vpack.c.b16 %v606, %v605
  %v621 = vpack.c.b16 %v608, %v607
  %v622 = vpack.c.b16 %v610, %v609
  %v623 = vpack.c.b16 %v612, %v611
  %v624 = vpack.c.b16 %v614, %v613
  %v625 = vpack.c.b16 %v616, %v615
  %v626 = vpack.c.b16 %v618, %v617
  %635 = vmatprep.subr.bf16.mxu0 0
  %636 = vmatpush1.bf16.msra.mxu0 %v619
  %637 = vmatprep.subr.bf16.mxu0 0
  %638 = vmatpush1.bf16.msra.mxu0 %v620
  %639 = vmatprep.subr.bf16.mxu0 0
  %640 = vmatpush1.bf16.msra.mxu0 %v621
  %641 = vmatprep.subr.bf16.mxu0 0
  %642 = vmatpush1.bf16.msra.mxu0 %v622
  %643 = vmatprep.subr.bf16.mxu0 0
  %644 = vmatpush1.bf16.msra.mxu0 %v623
  %645 = vmatprep.subr.bf16.mxu0 0
  %646 = vmatpush1.bf16.msra.mxu0 %v624
  %647 = vmatprep.subr.bf16.mxu0 0
  %648 = vmatpush1.bf16.msra.mxu0 %v625
  %649 = vmatprep.subr.bf16.mxu0 0
  %650 = vmatpush1.bf16.msra.mxu0 %v626
  %651 = vmatprep.subr.bf16.mxu0 0
  %652 = vmatpush1.bf16.msra.mxu0 0
  %653 = vmatprep.subr.bf16.mxu0 0
  %654 = vmatpush1.bf16.msra.mxu0 0
  %655 = vmatprep.subr.bf16.mxu0 0
  %656 = vmatpush1.bf16.msra.mxu0 0
  %657 = vmatprep.subr.bf16.mxu0 0
  %658 = vmatpush1.bf16.msra.mxu0 0
  %659 = vmatprep.subr.bf16.mxu0 0
  %660 = vmatpush1.bf16.msra.mxu0 0
  %661 = vmatprep.subr.bf16.mxu0 0
  %662 = vmatpush1.bf16.msra.mxu0 0
  %663 = vmatprep.subr.bf16.mxu0 0
  %664 = vmatpush1.bf16.msra.mxu0 0
  %665 = vmatprep.subr.bf16.mxu0 0
  %666 = vmatpush1.bf16.msra.mxu0 0
  %667 = vmatprep.mubr.bf16.mxu0 0
  %668 = vmatmul.mubr.bf16.gmra.mrb[0].mxu0 %v564
  %v669 = vpop.f32.mrb[0].mxu0
  %v670 = vadd.f32 %v586, %v669
  %v671 = vpop.f32.mrb[0].mxu0
  %v672 = vpop.f32.mrb[0].mxu0
  %v673 = vadd.f32 %v586, %v672
  %v674 = vpop.f32.mrb[0].mxu0
  %675 = vdwg.mxu0
  %676 = vmax.xlane.f32.xlu0 %v670
  %v677 = vpop.xlane.xlu0 %676
  %678 = vmax.xlane.f32.xlu0 %v673
  %v679 = vpop.xlane.xlu0 %678
  %v680 = vsub.f32 %v670, %v677
  %v681 = vsub.f32 %v673, %v679
  %v682 = vmul.f32 %v680, 1.442695
  %v683 = vpow.pop %v682
  %v684 = vmul.f32 %v681, 1.442695
  %v685 = vpow.pop %v684
  %686 = vadd.xlane.f32.xlu0 %v683
  %v687 = vpop.xlane.xlu0 %686
  %688 = vadd.xlane.f32.xlu0 %v685
  %v689 = vpop.xlane.xlu0 %688
  %v690 = vlog2.pop %v687
  %v691 = vmul.f32 %v690, 0.6931472
  %v692 = vlog2.pop %v689
  %v693 = vmul.f32 %v692, 0.6931472
  %v694 = vsub.f32 %v680, %v691
  %v695 = vsub.f32 %v681, %v693
  %696 = vst [vmem:[%s4] sm:$0xff] %v694
  %697 = vst [vmem:[%s4 + $0x8] sm:$0xff] %v695
  // Predicated region
  $region18: #{model_d_forward.1} parent=0 // pred_check
    _
  $region19: #{model_d_forward.1} parent=0 // pred_check_branch
    %699 = sbr.rel (0) target = $region21
  $region20: #{model_d_forward.1} parent=0 // pred_region
    _
  $region21: #{model_d_forward.1} parent=0 // pred_fallthru
    _
  // Predicated region
  $region22: #{model_d_forward.1} parent=0 // pred_check
    _
  $region23: #{model_d_forward.1} parent=0 // pred_check_branch
    %701 = sbr.rel (0) target = $region25
  $region24: #{model_d_forward.1} parent=0 // pred_region
    _
  $region25: #{model_d_forward.1} parent=0 // pred_fallthru
    _

</llo_original>
